<compile_context>
chip_gen: v5e
topology: v5e:2x2
jax: 0.10.0
libtpu: 0.0.40
codegen_flags: <defaults>
</compile_context>

<pallas_src>
import functools

import jax
import jax.numpy as jnp
from jax.experimental import pallas as pl
from jax.experimental.pallas import tpu as pltpu

_LANES = 128
_SUBLANES = 8


def _round_up(n, m):
    return ((n + m - 1) // m) * m


def _diloss_kernel(a_ref, b_ref, y_ref, d_ref, out_ref, *,
                   block_rows, lanes, last_tile, valid_in_last):
    # Upcast in-kernel (inputs may be bf16); all math stays in f32.
    a = a_ref[...].astype(jnp.float32)   # logits[:, :C]   (lane-dense packed)
    b = b_ref[...].astype(jnp.float32)   # logits[:, C:2C] (lane-dense packed)
    y = y_ref[...].astype(jnp.float32)   # labels          (lane-dense packed)
    d = d_ref[...].astype(jnp.float32)   # per-element domain label

    # Keep the lerp (not jnp.where): biases are not guaranteed to be 0/1.
    x = d * a + (jnp.float32(1.0) - d) * b

    # Numerically stable binary_cross_entropy_with_logits (matches PyTorch).
    per = jnp.maximum(x, 0.0) - x * y + jnp.log1p(jnp.exp(-jnp.abs(x)))

    def _reduce(v):
        # Lane/sublane-wise partial sum: fold block_rows down to 8 sublanes
        # with pure VPU adds (the reshape is (8,128)-tile aligned -> no data
        # movement, no XLU cross-lane work).
        return v.reshape(block_rows // _SUBLANES, _SUBLANES, lanes).sum(axis=0)

    if valid_in_last < block_rows * lanes:
        # Zero padding exists and lives entirely in the last tile. Gate the
        # masking work with pl.when so only the last grid step pays for it.
        is_last = pl.program_id(0) == last_tile

        @pl.when(jnp.logical_not(is_last))
        def _():
            out_ref[...] = _reduce(per)

        @pl.when(is_last)
        def _():
            row = jax.lax.broadcasted_iota(jnp.int32, (block_rows, lanes), 0)
            lane = jax.lax.broadcasted_iota(jnp.int32, (block_rows, lanes), 1)
            local_idx = row * lanes + lane            # local -> no i32 overflow
            keep = local_idx < valid_in_last
            out_ref[...] = _reduce(jnp.where(keep, per, jnp.float32(0.0)))
    else:
        out_ref[...] = _reduce(per)


def diloss_binary(logits, labels, biases, *, max_block_rows=1024):
    """DILossBinary forward. logits: (B, 2C), labels: (B, C), biases: (B,)."""
    B, two_c = logits.shape
    C = two_c // 2
    assert labels.shape == (B, C)
    assert biases.shape == (B,)

    N = B * C

    # Pre-split the logits halves in the wrapper (keeps the in-kernel select
    # pure VPU work) and broadcast the bias to one value per loss element.
    a = logits[:, :C]
    b = logits[:, C:2 * C]
    d = jnp.broadcast_to(biases.reshape(B, 1), (B, C)).astype(biases.dtype)

    # Lane-dense repacking: flatten, zero-pad, reshape to (rows, 128).
    rows_needed = -(-N // _LANES)
    block_rows = min(_round_up(max_block_rows, _SUBLANES),
                     _round_up(rows_needed, _SUBLANES))
    total_rows = _round_up(rows_needed, block_rows)
    grid = total_rows // block_rows
    pad = total_rows * _LANES - N

    def pack(v):
        v = v.reshape(-1)
        if pad:
            v = jnp.pad(v, (0, pad))
        return v.reshape(total_rows, _LANES)

    a_p, b_p, y_p, d_p = pack(a), pack(b), pack(labels), pack(d)

    valid_in_last = N - (grid - 1) * block_rows * _LANES
    kernel = functools.partial(
        _diloss_kernel,
        block_rows=block_rows, lanes=_LANES,
        last_tile=grid - 1, valid_in_last=valid_in_last)

    tile_spec = pl.BlockSpec((block_rows, _LANES), lambda i: (i, 0))

    partials = pl.pallas_call(
        kernel,
        out_shape=jax.ShapeDtypeStruct((grid * _SUBLANES, _LANES), jnp.float32),
        grid_spec=pltpu.PrefetchScalarGridSpec(
            num_scalar_prefetch=0,
            grid=(grid,),
            in_specs=[tile_spec, tile_spec, tile_spec, tile_spec],
            out_specs=pl.BlockSpec((_SUBLANES, _LANES), lambda i: (i, 0)),
        ),
        compiler_params=pltpu.CompilerParams(
            dimension_semantics=("parallel",),   # no cross-step carry -> megacore-safe
            vmem_limit_bytes=32 * 1024 * 1024,   # ~4 MiB actually used; safe on v5e/v6e/v7x
        ),
    )(a_p, b_p, y_p, d_p)

    # Tiny final reduce + mean (once per call, not per grid step).
    return jnp.sum(partials) / jnp.float32(N)


def diloss_binary_ref(logits, labels, biases):
    """Pure-JAX reference mirroring the PyTorch forward exactly."""
    d = biases[:, None].astype(jnp.float32)
    c = logits.shape[1] // 2
    x = d * logits[:, :c].astype(jnp.float32) + (1.0 - d) * logits[:, c:2 * c].astype(jnp.float32)
    y = labels.astype(jnp.float32)
    per = jnp.maximum(x, 0.0) - x * y + jnp.log1p(jnp.exp(-jnp.abs(x)))
    return jnp.mean(per)


if __name__ == "__main__":
    key = jax.random.PRNGKey(0)
    k1, k2, k3, k4, k5, k6, k7, k8, k9 = jax.random.split(key, 9)

    # Check 1: small shapes consistent with the module (binary-domain loss, C = 2).
    B, C = 16, 2
    logits = jax.random.normal(k1, (B, 2 * C), dtype=jnp.float32)
    labels = jax.random.bernoulli(k2, 0.5, (B, C)).astype(jnp.float32)
    biases = jax.random.bernoulli(k3, 0.5, (B,)).astype(jnp.float32)

    loss = jax.block_until_ready(diloss_binary(logits, labels, biases))
    ref = diloss_binary_ref(logits, labels, biases)
    assert jnp.allclose(loss, ref, rtol=1e-5, atol=1e-5), (loss, ref)

    # Check 2: ragged size, multi-tile grid, tail masking, fractional biases.
    B2, C2 = 64, 40
    logits2 = jax.random.normal(k4, (B2, 2 * C2), dtype=jnp.float32)
    labels2 = jax.random.bernoulli(k5, 0.5, (B2, C2)).astype(jnp.float32)
    biases2 = jax.random.uniform(k6, (B2,), dtype=jnp.float32)

    loss2 = jax.block_until_ready(
        diloss_binary(logits2, labels2, biases2, max_block_rows=8))
    ref2 = diloss_binary_ref(logits2, labels2, biases2)
    assert jnp.allclose(loss2, ref2, rtol=1e-5, atol=1e-5), (loss2, ref2)

    # Check 3: bf16 logits/labels path (in-kernel upcast), exact (8,128)-multiple size.
    B3, C3 = 32, 32
    logits3 = jax.random.normal(k7, (B3, 2 * C3), dtype=jnp.bfloat16)
    labels3 = jax.random.bernoulli(k8, 0.5, (B3, C3)).astype(jnp.bfloat16)
    biases3 = jax.random.bernoulli(k9, 0.5, (B3,)).astype(jnp.float32)

    loss3 = jax.block_until_ready(diloss_binary(logits3, labels3, biases3))
    ref3 = diloss_binary_ref(logits3, labels3, biases3)
    assert jnp.allclose(loss3, ref3, rtol=2e-2, atol=2e-2), (loss3, ref3)

    print("KERNEL_OK")
</pallas_src>

<mosaic_0001>
module attributes {stable_mosaic.version = 11 : i64} {
  func.func @_diloss_kernel(%arg0: i32, %arg1: memref<8x128xf32, #tpu.memory_space<vmem>>, %arg2: memref<8x128xf32, #tpu.memory_space<vmem>>, %arg3: memref<8x128xf32, #tpu.memory_space<vmem>>, %arg4: memref<8x128xf32, #tpu.memory_space<vmem>>, %arg5: memref<8x128xf32, #tpu.memory_space<vmem>>) attributes {dimension_semantics = [#tpu.dimension_semantics<parallel>], iteration_bounds = array<i64: 1>, scalar_prefetch = 0 : i64, scratch_operands = 0 : i64, tpu.core_type = #tpu.core_type<tc>, window_params = [{transform_indices = @transform_0, window_bounds = array<i64: 8, 128>}, {transform_indices = @transform_1, window_bounds = array<i64: 8, 128>}, {transform_indices = @transform_2, window_bounds = array<i64: 8, 128>}, {transform_indices = @transform_3, window_bounds = array<i64: 8, 128>}, {transform_indices = @transform_4, window_bounds = array<i64: 8, 128>}]} {
    %c0 = arith.constant 0 : index
    %c0_0 = arith.constant 0 : index
    %0 = vector.load %arg1[%c0, %c0_0] : memref<8x128xf32, #tpu.memory_space<vmem>>, vector<8x128xf32>
    %c0_1 = arith.constant 0 : index
    %c0_2 = arith.constant 0 : index
    %1 = vector.load %arg2[%c0_1, %c0_2] : memref<8x128xf32, #tpu.memory_space<vmem>>, vector<8x128xf32>
    %c0_3 = arith.constant 0 : index
    %c0_4 = arith.constant 0 : index
    %2 = vector.load %arg3[%c0_3, %c0_4] : memref<8x128xf32, #tpu.memory_space<vmem>>, vector<8x128xf32>
    %c0_5 = arith.constant 0 : index
    %c0_6 = arith.constant 0 : index
    %3 = vector.load %arg4[%c0_5, %c0_6] : memref<8x128xf32, #tpu.memory_space<vmem>>, vector<8x128xf32>
    %4 = arith.mulf %3, %0 : vector<8x128xf32>
    %cst = arith.constant 1.000000e+00 : f32
    %5 = vector.broadcast %cst : f32 to vector<8x128xf32>
    %6 = arith.subf %5, %3 : vector<8x128xf32>
    %7 = arith.mulf %6, %1 : vector<8x128xf32>
    %8 = arith.addf %4, %7 : vector<8x128xf32>
    %cst_7 = arith.constant 0.000000e+00 : f32
    %9 = vector.broadcast %cst_7 : f32 to vector<8x128xf32>
    %10 = arith.maximumf %8, %9 : vector<8x128xf32>
    %11 = arith.mulf %8, %2 : vector<8x128xf32>
    %12 = arith.subf %10, %11 : vector<8x128xf32>
    %13 = math.absf %8 : vector<8x128xf32>
    %cst_8 = arith.constant 0.000000e+00 : f32
    %14 = vector.broadcast %cst_8 : f32 to vector<8x128xf32>
    %15 = arith.subf %14, %13 : vector<8x128xf32>
    %16 = math.exp %15 : vector<8x128xf32>
    %17 = math.log1p %16 : vector<8x128xf32>
    %18 = arith.addf %12, %17 : vector<8x128xf32>
    %c0_i32 = arith.constant 0 : i32
    %19 = arith.cmpi eq, %arg0, %c0_i32 : i32
    %true = arith.constant true
    %20 = arith.xori %19, %true : i1
    %21 = arith.extui %20 : i1 to i32
    %c0_i32_9 = arith.constant 0 : i32
    %22 = arith.cmpi ne, %21, %c0_i32_9 : i32
    scf.if %22 {
      %25 = vector.shape_cast %18 : vector<8x128xf32> to vector<1x8x128xf32>
      %cst_11 = arith.constant dense<0.000000e+00> : vector<8x128xf32>
      %26 = vector.multi_reduction <add>, %25, %cst_11 [0] : vector<1x8x128xf32> to vector<8x128xf32>
      %c0_12 = arith.constant 0 : index
      %c0_13 = arith.constant 0 : index
      %27 = vector.load %arg5[%c0_12, %c0_13] : memref<8x128xf32, #tpu.memory_space<vmem>>, vector<8x128xf32>
      tpu.vector_store %arg5[%c0_12, %c0_13], %26 {strides = array<i32>} : memref<8x128xf32, #tpu.memory_space<vmem>>, vector<8x128xf32>,
    } else {
    }
    %23 = arith.extui %19 : i1 to i32
    %c0_i32_10 = arith.constant 0 : i32
    %24 = arith.cmpi ne, %23, %c0_i32_10 : i32
    scf.if %24 {
      %25 = tpu.iota {dimensions = array<i32: 0>} : vector<8x128xi32>
      %26 = tpu.iota {dimensions = array<i32: 1>} : vector<8x128xi32>
      %c128_i32 = arith.constant 128 : i32
      %27 = vector.broadcast %c128_i32 : i32 to vector<8x128xi32>
      %28 = arith.muli %25, %27 : vector<8x128xi32>
      %29 = arith.addi %28, %26 : vector<8x128xi32>
      %c32_i32 = arith.constant 32 : i32
      %30 = vector.broadcast %c32_i32 : i32 to vector<8x128xi32>
      %31 = arith.cmpi slt, %29, %30 : vector<8x128xi32>
      %cst_11 = arith.constant 0.000000e+00 : f32
      %32 = vector.broadcast %cst_11 : f32 to vector<8x128xf32>
      %33 = arith.select %31, %18, %32 : vector<8x128xi1>, vector<8x128xf32>
      %34 = vector.shape_cast %33 : vector<8x128xf32> to vector<1x8x128xf32>
      %cst_12 = arith.constant dense<0.000000e+00> : vector<8x128xf32>
      %35 = vector.multi_reduction <add>, %34, %cst_12 [0] : vector<1x8x128xf32> to vector<8x128xf32>
      %c0_13 = arith.constant 0 : index
      %c0_14 = arith.constant 0 : index
      %36 = vector.load %arg5[%c0_13, %c0_14] : memref<8x128xf32, #tpu.memory_space<vmem>>, vector<8x128xf32>
      tpu.vector_store %arg5[%c0_13, %c0_14], %35 {strides = array<i32>} : memref<8x128xf32, #tpu.memory_space<vmem>>, vector<8x128xf32>,
    } else {
    }
    return
  }
  func.func @transform_0(%arg0: i32) -> (i32, i32) {
    %c0_i32 = arith.constant 0 : i32
    %c0_i32_0 = arith.constant 0 : i32
    return %arg0, %c0_i32 : i32, i32
  }
  func.func @transform_1(%arg0: i32) -> (i32, i32) {
    %c0_i32 = arith.constant 0 : i32
    %c0_i32_0 = arith.constant 0 : i32
    return %arg0, %c0_i32 : i32, i32
  }
  func.func @transform_2(%arg0: i32) -> (i32, i32) {
    %c0_i32 = arith.constant 0 : i32
    %c0_i32_0 = arith.constant 0 : i32
    return %arg0, %c0_i32 : i32, i32
  }
  func.func @transform_3(%arg0: i32) -> (i32, i32) {
    %c0_i32 = arith.constant 0 : i32
    %c0_i32_0 = arith.constant 0 : i32
    return %arg0, %c0_i32 : i32, i32
  }
  func.func @transform_4(%arg0: i32) -> (i32, i32) {
    %c0_i32 = arith.constant 0 : i32
    %c0_i32_0 = arith.constant 0 : i32
    return %arg0, %c0_i32 : i32, i32
  }
}

</mosaic_0001>

<llo_original>
// kernel: tpu_custom_call.1
$region0: #{tpu_custom_call.1}
  #allocation0 [shape = 'u32[]', space=smem, size = 0x4, offset = 0x4, fixed_abs, tag = 'smem constant byte address 0x4 - core index']
  #allocation1 [shape = 'u32[72,128]{1,0:T(1,128)}', space=vmem, size = 0x9000, scoped, tag = 'internal scratch']
  %s0 = inlined_call_operand.hbm [shape: f32[8,128], index: 0, kind: input, shape index: {}]
  %s1 = inlined_call_operand.hbm [shape: f32[8,128], index: 1, kind: input, shape index: {}]
  %s2 = inlined_call_operand.hbm [shape: f32[8,128], index: 2, kind: input, shape index: {}]
  %s3 = inlined_call_operand.hbm [shape: f32[8,128], index: 3, kind: input, shape index: {}]
  %s4 = inlined_call_operand.hbm [shape: f32[8,128], index: 4, kind: output, shape index: {}]
  %s5 = sld [smem:[#allocation0]]
  $region50: #{tpu_custom_call.1} parent=0
    _
  %s7 = ssub.s32 1, %s5
  %s8 = scalar_select 0, %s7, %s5
  $region1: #{tpu_custom_call.1} parent=0
    #allocation2 [shape = 'u8[4096]{0}', space=vmem, size = 0x1000, scoped, tag = 'input window, operand 0, single buffered']
    #allocation3 [shape = 's32[1]{0}', space=sflag, size = 0x4, scoped, tag = 'scoped memory for tpu_custom_call.1']
    #allocation4 [shape = 's32[1]{0}', space=sflag, size = 0x4, scoped, tag = 'scoped memory for tpu_custom_call.1']
    #allocation5 [shape = 'u8[4096]{0}', space=vmem, size = 0x1000, scoped, tag = 'input window, operand 1, single buffered']
    #allocation6 [shape = 's32[1]{0}', space=sflag, size = 0x4, scoped, tag = 'scoped memory for tpu_custom_call.1']
    #allocation7 [shape = 'u8[4096]{0}', space=vmem, size = 0x1000, scoped, tag = 'input window, operand 2, single buffered']
    #allocation8 [shape = 'u8[4096]{0}', space=vmem, size = 0x1000, scoped, tag = 'input window, operand 3, single buffered']
    #allocation9 [shape = 's32[1]{0}', space=sflag, size = 0x4, scoped, tag = 'scoped memory for tpu_custom_call.1']
    #allocation10 [shape = 'u8[4096]{0}', space=vmem, size = 0x1000, scoped, tag = 'output window, operand 0, single buffered']
    %9 = vsyncpa [#allocation3], 0
    %10 = vsyncpa [#allocation6], 0
    %11 = vsyncpa [#allocation9], 0
    %12 = vsyncpa [#allocation4], 0
    // Predicated region
    $region2: #{tpu_custom_call.1} parent=1 // pred_check
      _
    $region3: #{tpu_custom_call.1} parent=1 // pred_check_branch
      %14 = sbr.rel (0) target = $region5
    $region4: #{tpu_custom_call.1} parent=1 // pred_region
      %16 = vsyncadd [#allocation3], 0
      %s18 = sshll.u32 %s0, 4
      %s19 = int_to_ptr.hbm [resolvable:$true] %s18
      %s20 = sshll.u32 [#allocation2], 4
      %s21 = int_to_ptr.vmem [resolvable:$true] %s20
      %23 = dma.hbm_to_vmem [thread:$0]  %s19, 128, %s21, [#allocation3]
    $region5: #{tpu_custom_call.1} parent=1 // pred_fallthru
      _
    // Predicated region
    $region6: #{tpu_custom_call.1} parent=1 // pred_check
      _
    $region7: #{tpu_custom_call.1} parent=1 // pred_check_branch
      %25 = sbr.rel (0) target = $region9
    $region8: #{tpu_custom_call.1} parent=1 // pred_region
      %27 = vsyncadd [#allocation6], 0
      %s29 = sshll.u32 %s1, 4
      %s30 = int_to_ptr.hbm [resolvable:$true] %s29
      %s31 = sshll.u32 [#allocation5], 4
      %s32 = int_to_ptr.vmem [resolvable:$true] %s31
      %34 = dma.hbm_to_vmem [thread:$0]  %s30, 128, %s32, [#allocation6]
    $region9: #{tpu_custom_call.1} parent=1 // pred_fallthru
      _
    // Predicated region
    $region10: #{tpu_custom_call.1} parent=1 // pred_check
      _
    $region11: #{tpu_custom_call.1} parent=1 // pred_check_branch
      %36 = sbr.rel (0) target = $region13
    $region12: #{tpu_custom_call.1} parent=1 // pred_region
      %38 = vsyncadd [#allocation6], 0
      %s40 = sshll.u32 %s2, 4
      %s41 = int_to_ptr.hbm [resolvable:$true] %s40
      %s42 = sshll.u32 [#allocation7], 4
      %s43 = int_to_ptr.vmem [resolvable:$true] %s42
      %45 = dma.hbm_to_vmem [thread:$0]  %s41, 128, %s43, [#allocation6]
    $region13: #{tpu_custom_call.1} parent=1 // pred_fallthru
      _
    // Predicated region
    $region14: #{tpu_custom_call.1} parent=1 // pred_check
      _
    $region15: #{tpu_custom_call.1} parent=1 // pred_check_branch
      %47 = sbr.rel (0) target = $region17
    $region16: #{tpu_custom_call.1} parent=1 // pred_region
      %49 = vsyncadd [#allocation9], 0
      %s51 = sshll.u32 %s3, 4
      %s52 = int_to_ptr.hbm [resolvable:$true] %s51
      %s53 = sshll.u32 [#allocation8], 4
      %s54 = int_to_ptr.vmem [resolvable:$true] %s53
      %56 = dma.hbm_to_vmem [thread:$0]  %s52, 128, %s54, [#allocation9]
    $region17: #{tpu_custom_call.1} parent=1 // pred_fallthru
      _
    // Predicated region
    $region18: #{tpu_custom_call.1} parent=1 // pred_check
      _
    $region19: #{tpu_custom_call.1} parent=1 // pred_check_branch
      %58 = sbr.rel (0) target = $region21
    $region20: #{tpu_custom_call.1} parent=1 // pred_region
      %60 = dma.done [#allocation3], 128
    $region21: #{tpu_custom_call.1} parent=1 // pred_fallthru
      _
    // Predicated region
    $region22: #{tpu_custom_call.1} parent=1 // pred_check
      _
    $region23: #{tpu_custom_call.1} parent=1 // pred_check_branch
      %62 = sbr.rel (0) target = $region25
    $region24: #{tpu_custom_call.1} parent=1 // pred_region
      %64 = dma.done [#allocation6], 128
    $region25: #{tpu_custom_call.1} parent=1 // pred_fallthru
      _
    // Predicated region
    $region26: #{tpu_custom_call.1} parent=1 // pred_check
      _
    $region27: #{tpu_custom_call.1} parent=1 // pred_check_branch
      %66 = sbr.rel (0) target = $region29
    $region28: #{tpu_custom_call.1} parent=1 // pred_region
      %68 = dma.done [#allocation6], 128
    $region29: #{tpu_custom_call.1} parent=1 // pred_fallthru
      _
    // Predicated region
    $region30: #{tpu_custom_call.1} parent=1 // pred_check
      _
    $region31: #{tpu_custom_call.1} parent=1 // pred_check_branch
      %70 = sbr.rel (0) target = $region33
    $region32: #{tpu_custom_call.1} parent=1 // pred_region
      %72 = dma.done [#allocation9], 128
    $region33: #{tpu_custom_call.1} parent=1 // pred_fallthru
      _
    %v73 = vld [vmem:[#allocation2] sm:$0xff]
    %v74 = vld [vmem:[#allocation5] sm:$0xff]
    %v75 = vld [vmem:[#allocation7] sm:$0xff]
    %v76 = vld [vmem:[#allocation8] sm:$0xff]
    %v77 = vmul.f32 %v76, %v73
    %v78 = vsub.f32 1.0, %v76
    %v79 = vmul.f32 %v78, %v74
    %v80 = vadd.f32 %v77, %v79
    %v81 = vmax.f32 %v80, 0.0
    %v82 = vmul.f32 %v80, %v75
    %v83 = vsub.f32 %v81, %v82
    %v84 = vand.u32 2147483647, %v80
    %v85 = vsub.f32 0.0, %v84
    %v86 = vmul.f32 %v85, 1.442695
    %v87 = vpow.pop %v86
    %v88 = vadd.f32 %v87, 1.0
    %v89 = vlog2.pop %v88
    %v90 = vmul.f32 %v89, 0.6931472
    %v91 = vmul.f32 -0.5, %v87
    %v92 = vadd.f32 %v91, 1.0
    %v93 = vmul.f32 %v92, %v87
    %v94 = vand.u32 2147483647, %v87
    %vm95 = vcmp.lt.f32.partialorder %v94, 0.0004427343
    %v96 = vsel %vm95, %v93, %v90
    %v97 = vadd.f32 %v83, %v96
    %p98 = scmp.eq.s32.totalorder 0, 0
    %p99 = scmp.ne.s32.totalorder 0, 0
    // Predicated region
    $region34: #{tpu_custom_call.1} parent=1 // pred_check
      %p100 = pneg %p99
    $region35: #{tpu_custom_call.1} parent=1 // pred_check_branch
      %102 = sbr.rel (%p100) target = $region37
    $region36: #{tpu_custom_call.1} parent=1 // pred_region
      %v103 = vadd.f32 %v97, 0.0
      %104 = vst [vmem:[#allocation10] sm:$0xff] %v103
    $region37: #{tpu_custom_call.1} parent=1 // pred_fallthru
      _
    // Predicated region
    $region38: #{tpu_custom_call.1} parent=1 // pred_check
      %p105 = pneg %p98
    $region39: #{tpu_custom_call.1} parent=1 // pred_check_branch
      %107 = sbr.rel (%p105) target = $region41
    $region40: #{tpu_custom_call.1} parent=1 // pred_region
      %v108 = vlaneseq
      %v109 = vshrl.u32 %v108, 7
      %v110 = vlaneseq
      %v111 = vand.u32 %v110, 127
      %v112 = vmul.u32 %v109, 128
      %v113 = vadd.s32 %v112, %v111
      %vm114 = vcmp.lt.s32.totalorder %v113, 32
      %v115 = vsel %vm114, %v97, 0.0
      %v116 = vadd.f32 %v115, 0.0
      %117 = vst [vmem:[#allocation10] sm:$0xff] %v116
    $region41: #{tpu_custom_call.1} parent=1 // pred_fallthru
      _
    // Predicated region
    $region42: #{tpu_custom_call.1} parent=1 // pred_check
      _
    $region43: #{tpu_custom_call.1} parent=1 // pred_check_branch
      %119 = sbr.rel (0) target = $region45
    $region44: #{tpu_custom_call.1} parent=1 // pred_region
      %121 = vsyncadd [#allocation4], 0
      %s123 = sshll.u32 [#allocation10], 4
      %s124 = int_to_ptr.vmem [resolvable:$true] %s123
      %s125 = sshll.u32 %s4, 4
      %s126 = int_to_ptr.hbm [resolvable:$true] %s125
      %128 = dma.vmem_to_hbm [thread:$0]  %s124, 128, %s126, [#allocation4]
    $region45: #{tpu_custom_call.1} parent=1 // pred_fallthru
      _
    // Predicated region
    $region46: #{tpu_custom_call.1} parent=1 // pred_check
      _
    $region47: #{tpu_custom_call.1} parent=1 // pred_check_branch
      %130 = sbr.rel (0) target = $region49
    $region48: #{tpu_custom_call.1} parent=1 // pred_region
      %132 = dma.done [#allocation4], 128
    $region49: #{tpu_custom_call.1} parent=1 // pred_fallthru
      _
    %133 = vsyncpa [#allocation3], 1
    %134 = vsyncpa [#allocation6], 1
    %135 = vsyncpa [#allocation9], 1
    %136 = vsyncpa [#allocation4], 1

</llo_original>
